<compile_context>
chip_gen: v7x
topology: tpu7x:2x2x1
jax: 0.10.0
libtpu: 0.0.40
codegen_flags: <defaults>
</compile_context>

<pallas_src>
import dataclasses
import functools
import typing

import jax
import jax.numpy as jnp
from jax import lax
from jax.experimental import pallas as pl
from jax.experimental.pallas import tpu as pltpu


_LANE = 128            # lane width (last dim of a vreg tile)
_SUBLANE_BF16 = 16     # bf16 packs 2 rows/sublane -> 16-row granularity
_VMEM_LIMIT = 32 * 1024 * 1024   # <= v7x scoped default, < physical on all chips


def _round_up(n: int, m: int) -> int:
    return ((n + m - 1) // m) * m


# ----------------------- tiled linear (+bias, +activation) -------------------
# y = act(x @ w + b) with auto-pipelined BlockSpecs, bf16 MXU operands, an f32
# accumulator in VMEM scratch and pl.when init/finalize.  Used by FCEncoder.

@dataclasses.dataclass
class LinearParams:
    w: jax.Array        # (Kp, Np) bf16, padded/cast ONCE at construction
    bias: jax.Array     # (1, Np)  f32, padded ONCE at construction
    in_dim: int
    out_dim: int
    tk: int
    tn: int


def make_linear_params(w, b, *, max_tk=512, max_tn=512) -> LinearParams:
    K, N = w.shape
    tk = min(_round_up(K, _LANE), max_tk)      # multiples of 128, up to 512
    tn = min(_round_up(N, _LANE), max_tn)
    Kp, Np = _round_up(K, tk), _round_up(N, tn)
    wp = jnp.pad(w, ((0, Kp - K), (0, Np - N))).astype(jnp.bfloat16)
    bp = jnp.pad(b.astype(jnp.float32), ((0, 0), (0, Np - N)))
    return LinearParams(wp, bp, K, N, tk, tn)


def _linear_kernel(x_ref, w_ref, b_ref, o_ref, acc_ref, *, activation):
    k = pl.program_id(2)

    @pl.when(k == 0)
    def _init():
        acc_ref[...] = jnp.zeros_like(acc_ref)

    # bf16 x bf16 -> f32 accumulation on the MXU.
    acc_ref[...] += jnp.dot(x_ref[...], w_ref[...],
                            preferred_element_type=jnp.float32)

    @pl.when(k == pl.num_programs(2) - 1)
    def _finalize():
        y = acc_ref[...] + b_ref[...]           # f32 epilogue (v5e has no bf16 VPU)
        if activation == "relu":
            y = jnp.maximum(y, 0.0)
        o_ref[...] = y.astype(o_ref.dtype)      # lane-dense, unmasked stores


def linear_forward(x, params: LinearParams, *, activation=None, max_tm=256):
    M, K = x.shape
    Kp, Np = params.w.shape
    tk, tn = params.tk, params.tn
    tm = min(_round_up(M, _SUBLANE_BF16), max_tm)
    Mp = _round_up(M, tm)
    xp = x
    if (Mp, Kp) != (M, K):
        xp = jnp.pad(x, ((0, Mp - M), (0, Kp - K)))
    xp = xp.astype(jnp.bfloat16)

    out = pl.pallas_call(
        functools.partial(_linear_kernel, activation=activation),
        out_shape=jax.ShapeDtypeStruct((Mp, Np), jnp.float32),
        grid_spec=pltpu.PrefetchScalarGridSpec(
            num_scalar_prefetch=0,
            grid=(Mp // tm, Np // tn, Kp // tk),
            in_specs=[
                pl.BlockSpec((tm, tk), lambda i, j, k: (i, k)),
                pl.BlockSpec((tk, tn), lambda i, j, k: (k, j)),
                pl.BlockSpec((1, tn), lambda i, j, k: (0, j)),
            ],
            out_specs=pl.BlockSpec((tm, tn), lambda i, j, k: (i, j)),
            scratch_shapes=[pltpu.VMEM((tm, tn), jnp.float32)],
        ),
        compiler_params=pltpu.CompilerParams(
            dimension_semantics=("parallel", "parallel", "arbitrary"),
            vmem_limit_bytes=_VMEM_LIMIT),
    )(xp, params.w, params.bias)
    return out[:M, :params.out_dim]


def fc_encoder(x, params: LinearParams):
    # FCEncoder forward: relu(x @ w + b)
    return linear_forward(x, params, activation="relu")


# ----------------------------- RNN encoder kernel ----------------------------
# Grid = (batch tiles [parallel], time chunks [sequential]).  Per chunk:
#   (1) hoisted projection xw = x_chunk @ Wx + b as ONE MXU matmul into VMEM
#       scratch (bf16 operands, f32 accumulation),
#   (2) static, unrolled tanh recurrence over the chunk's timesteps, carrying
#       the hidden state in a VMEM scratch and freezing examples past their
#       sequence length.
# Chunks whose start is past max(length) are skipped (scalar prefetch).

@dataclasses.dataclass
class RNNParams:
    wx: jax.Array       # (Dp, Hp) bf16
    wh: jax.Array       # (Hp, Hp) bf16
    bias: jax.Array     # (1, Hp)  f32
    in_dim: int
    hidden: int


def make_rnn_params(wx, wh, b) -> RNNParams:
    D, H = wx.shape
    Dp, Hp = _round_up(D, _LANE), _round_up(H, _LANE)
    wxp = jnp.pad(wx, ((0, Dp - D), (0, Hp - H))).astype(jnp.bfloat16)
    whp = jnp.pad(wh, ((0, Hp - H), (0, Hp - H))).astype(jnp.bfloat16)
    bp = jnp.pad(b.astype(jnp.float32), ((0, 0), (0, Hp - H)))
    return RNNParams(wxp, whp, bp, D, H)


def _pick_chunk_t(T, bt, Dp, Hp, budget_bytes=8 * 1024 * 1024):
    # Per-timestep VMEM held by the kernel: one f32 xw-scratch row block plus
    # the double-buffered bf16 input block rows.
    per_step = bt * (Hp * 4 + 2 * Dp * 2)
    ct = max(1, min(budget_bytes // per_step, T, 128))
    if ct >= 8:
        ct = (ct // 8) * 8        # sublane-aligned row blocks per step
    return int(ct)


def _rnn_kernel(max_len_ref, x_ref, wx_ref, wh_ref, b_ref, len_ref, o_ref,
                xw_ref, h_ref, *, bt, chunk_t):
    tc = pl.program_id(1)

    @pl.when(tc == 0)
    def _init():
        h_ref[...] = jnp.zeros_like(h_ref)

    chunk_start = tc * chunk_t

    # Skip entire chunks beyond the longest (clamped) sequence.
    @pl.when(chunk_start < max_len_ref[0])
    def _chunk():
        dp = x_ref.shape[-1]
        # Hoisted projection: one MXU matmul covers every timestep of the
        # chunk; bias added once.  Time-major layout -> step t is a contiguous
        # sublane-aligned row block of xw_ref.
        x2d = x_ref[...].reshape(chunk_t * bt, dp)
        xw_ref[...] = (jnp.dot(x2d, wx_ref[...],
                               preferred_element_type=jnp.float32)
                       + b_ref[...])
        lengths = len_ref[...]                     # (bt, 1) int32, hoisted

        # TODO(synk): for Hp <= MXU width, stage Wh once with
        # pltpu.matmul_push_rhs to shorten the serial per-step latency chain.
        def step(t, carry):
            row = pl.multiple_of(t * bt, bt)       # aligned row-block start
            xw_t = xw_ref[pl.ds(row, bt), :]       # (bt, Hp) slice for step t
            h_prev = h_ref[...]                    # carried state lives in VMEM
            h_new = jnp.tanh(
                xw_t + jnp.dot(h_prev.astype(jnp.bfloat16), wh_ref[...],
                               preferred_element_type=jnp.float32))
            # Freeze examples whose sequence length is exhausted.
            h_ref[...] = jnp.where(chunk_start + t < lengths, h_new, h_prev)
            return carry

        # Static trip count; unrolled so the LLO scheduler can overlap steps.
        unroll = True if chunk_t <= 16 else 8
        lax.fori_loop(0, chunk_t, step, 0, unroll=unroll)

    @pl.when(tc == pl.num_programs(1) - 1)
    def _finalize():
        o_ref[...] = h_ref[...].astype(o_ref.dtype)   # lane-dense (Hp % 128 == 0)


def rnn_encoder(x_btd, lengths, params: RNNParams, *, max_bt=128):
    B, T, D = x_btd.shape
    Dp, Hp = params.wx.shape
    bt = min(_round_up(B, _SUBLANE_BF16), max_bt)
    Bp = _round_up(B, bt)
    ct = _pick_chunk_t(T, bt, Dp, Hp)
    Tp = _round_up(T, ct)

    xp = jnp.pad(x_btd, ((0, Bp - B), (0, Tp - T), (0, Dp - D))).astype(jnp.bfloat16)
    # Time-major so each timestep of a chunk is a contiguous, 8/16-aligned row
    # block of the hoisted-projection scratch.
    # TODO(synk): fold this transpose into the producer (or per-chunk strided
    # DMA from pl.ANY) to drop the extra HBM pass over the activations.
    x_tbd = jnp.transpose(xp, (1, 0, 2))

    # Clamp lengths to T (matches the reference loop bound, avoids updating h
    # on zero-padded tail steps) and compute the chunk-skip bound.
    lens = jnp.minimum(lengths.astype(jnp.int32), T)
    max_len = jnp.max(lens).reshape(1)
    lens = jnp.pad(lens, (0, Bp - B)).reshape(Bp, 1)

    out = pl.pallas_call(
        functools.partial(_rnn_kernel, bt=bt, chunk_t=ct),
        out_shape=jax.ShapeDtypeStruct((Bp, Hp), jnp.float32),
        grid_spec=pltpu.PrefetchScalarGridSpec(
            num_scalar_prefetch=1,           # max_len -> SMEM
            grid=(Bp // bt, Tp // ct),       # (batch tiles, time chunks)
            in_specs=[
                pl.BlockSpec((ct, bt, Dp), lambda b, t, ml: (t, b, 0)),
                pl.BlockSpec((Dp, Hp), lambda b, t, ml: (0, 0)),
                pl.BlockSpec((Hp, Hp), lambda b, t, ml: (0, 0)),
                pl.BlockSpec((1, Hp), lambda b, t, ml: (0, 0)),
                pl.BlockSpec((bt, 1), lambda b, t, ml: (b, 0)),
            ],
            out_specs=pl.BlockSpec((bt, Hp), lambda b, t, ml: (b, 0)),
            scratch_shapes=[
                pltpu.VMEM((ct * bt, Hp), jnp.float32),   # hoisted projection
                pltpu.VMEM((bt, Hp), jnp.float32),        # carried hidden state
            ],
        ),
        compiler_params=pltpu.CompilerParams(
            dimension_semantics=("parallel", "arbitrary"),   # batch split across TCs
            vmem_limit_bytes=_VMEM_LIMIT),
    )(max_len, x_tbd, params.wx, params.wh, params.bias, lens)
    return out[:B, :params.hidden]


# ----------------------------- encoder bank ----------------------------------

@dataclasses.dataclass
class DialogInput:
    context: jax.Array          # [B, D_ctx]
    text: jax.Array             # [B, T, D_txt]
    text_seq_length: jax.Array  # [B]


class DialogEncoderBankPallas:
    """JAX/Pallas counterpart of DialogEncoderBank with FC + RNN encoders."""

    def __init__(self, ctx_in: int, ctx_out: int, txt_in: int, txt_hidden: int,
                 key: jax.Array):
        k = jax.random.split(key, 5)
        scale = lambda fan_in: 1.0 / jnp.sqrt(jnp.float32(fan_in))
        # f32 master copies (kept for the reference check).
        self.fc_w = jax.random.normal(k[0], (ctx_in, ctx_out), jnp.float32) * scale(ctx_in)
        self.fc_b = jax.random.normal(k[1], (1, ctx_out), jnp.float32) * 0.1
        self.rnn_wx = jax.random.normal(k[2], (txt_in, txt_hidden), jnp.float32) * scale(txt_in)
        self.rnn_wh = jax.random.normal(k[3], (txt_hidden, txt_hidden), jnp.float32) * scale(txt_hidden)
        self.rnn_b = jax.random.normal(k[4], (1, txt_hidden), jnp.float32) * 0.1
        # Pre-padded / pre-cast kernel operands: done ONCE, not on every forward.
        self._fc = make_linear_params(self.fc_w, self.fc_b)
        self._rnn = make_rnn_params(self.rnn_wx, self.rnn_wh, self.rnn_b)
        # mirrors _encoder_meta: (dialog, needs-length) flags per modality
        self._encoder_meta = {
            'context': dict(dialog=False, length=False),
            'text': dict(dialog=False, length=True),
        }

    @property
    def output_shapes(self) -> typing.Dict[str, int]:
        return {'context': self._fc.out_dim, 'text': self._rnn.hidden}

    def forward(self, inp: DialogInput, attention: typing.Dict[str, typing.Any],
                utterance_lengths: jax.Array = None) -> typing.Dict[str, jax.Array]:
        outputs = dict(attention)  # outputs = attention (pass-through), as in PyTorch
        # FC encoder on 'context' (no length arg, not dialog-level)
        outputs['context'] = fc_encoder(inp.context, self._fc)
        # RNN encoder on 'text' with 'text_seq_length'
        outputs['text'] = rnn_encoder(inp.text, inp.text_seq_length, self._rnn)
        return outputs


# ----------------------------- references (pure JAX) -------------------------
# bf16-matched references: same operand precision as the kernels (bf16 on the
# MXU, f32 accumulation / epilogue), so they differ only by accumulation order.

def _fc_ref(x, w, b):
    y = jnp.dot(x.astype(jnp.bfloat16), w.astype(jnp.bfloat16),
                preferred_element_type=jnp.float32) + b
    return jnp.maximum(y, 0.0)


def _rnn_ref(x, lengths, wx, wh, b):
    B, T, _ = x.shape
    H = wh.shape[0]
    bf = jnp.bfloat16
    xb, wxb, whb = x.astype(bf), wx.astype(bf), wh.astype(bf)
    h = jnp.zeros((B, H), jnp.float32)
    for t in range(T):
        xw_t = jnp.dot(xb[:, t, :], wxb, preferred_element_type=jnp.float32) + b
        h_new = jnp.tanh(xw_t + jnp.dot(h.astype(bf), whb,
                                        preferred_element_type=jnp.float32))
        h = jnp.where((t < lengths).reshape(B, 1), h_new, h)
    return h


# ----------------------------- demo ------------------------------------------

if __name__ == "__main__":
    B, D_CTX, OUT_CTX = 2, 16, 32
    T, D_TXT, H_TXT = 8, 16, 32

    key = jax.random.PRNGKey(0)
    k_ctx, k_txt, k_params = jax.random.split(key, 3)

    inp = DialogInput(
        context=jax.random.normal(k_ctx, (B, D_CTX), jnp.float32),
        text=jax.random.normal(k_txt, (B, T, D_TXT), jnp.float32),
        text_seq_length=jnp.array([T, T - 3], jnp.int32),
    )

    bank = DialogEncoderBankPallas(D_CTX, OUT_CTX, D_TXT, H_TXT, key=k_params)

    outputs = bank.forward(inp, attention={})
    outputs = jax.tree_util.tree_map(jax.block_until_ready, outputs)

    assert outputs['context'].shape == (B, OUT_CTX)
    assert outputs['text'].shape == (B, H_TXT)
    assert bool(jnp.all(jnp.isfinite(outputs['context'])))
    assert bool(jnp.all(jnp.isfinite(outputs['text'])))

    ctx_ref = _fc_ref(inp.context, bank.fc_w, bank.fc_b)
    txt_ref = _rnn_ref(inp.text, inp.text_seq_length, bank.rnn_wx, bank.rnn_wh, bank.rnn_b)
    assert bool(jnp.allclose(outputs['context'], ctx_ref, rtol=1e-2, atol=1e-2))
    assert bool(jnp.allclose(outputs['text'], txt_ref, rtol=1e-2, atol=1e-2))

    print("KERNEL_OK")
</pallas_src>

<mosaic_0001>
module attributes {stable_mosaic.version = 11 : i64} {
  func.func @_linear_kernel(%arg0: i32, %arg1: i32, %arg2: i32, %arg3: memref<16x128xbf16, #tpu.memory_space<vmem>>, %arg4: memref<128x128xbf16, #tpu.memory_space<vmem>>, %arg5: memref<1x128xf32, #tpu.memory_space<vmem>>, %arg6: memref<16x128xf32, #tpu.memory_space<vmem>>, %arg7: memref<16x128xf32, #tpu.memory_space<vmem>>) attributes {dimension_semantics = [#tpu.dimension_semantics<parallel>, #tpu.dimension_semantics<parallel>, #tpu.dimension_semantics<arbitrary>], iteration_bounds = array<i64: 1, 1, 1>, scalar_prefetch = 0 : i64, scratch_operands = 1 : i64, tpu.core_type = #tpu.core_type<tc>, window_params = [{transform_indices = @transform_0, window_bounds = array<i64: 16, 128>}, {transform_indices = @transform_1, window_bounds = array<i64: 128, 128>}, {transform_indices = @transform_2, window_bounds = array<i64: 1, 128>}, {transform_indices = @transform_3, window_bounds = array<i64: 16, 128>}]} {
    %c0_i32 = arith.constant 0 : i32
    %0 = arith.cmpi eq, %arg2, %c0_i32 : i32
    %1 = arith.extui %0 : i1 to i32
    %c0_i32_0 = arith.constant 0 : i32
    %2 = arith.cmpi ne, %1, %c0_i32_0 : i32
    scf.if %2 {
      %cst_10 = arith.constant 0.000000e+00 : f32
      %12 = vector.broadcast %cst_10 : f32 to vector<16x128xf32>
      %c0_11 = arith.constant 0 : index
      %c0_12 = arith.constant 0 : index
      %13 = vector.load %arg7[%c0_11, %c0_12] : memref<16x128xf32, #tpu.memory_space<vmem>>, vector<16x128xf32>
      tpu.vector_store %arg7[%c0_11, %c0_12], %12 {strides = array<i32>} : memref<16x128xf32, #tpu.memory_space<vmem>>, vector<16x128xf32>,
    } else {
    }
    %c0 = arith.constant 0 : index
    %c0_1 = arith.constant 0 : index
    %3 = vector.load %arg7[%c0, %c0_1] : memref<16x128xf32, #tpu.memory_space<vmem>>, vector<16x128xf32>
    %c0_2 = arith.constant 0 : index
    %c0_3 = arith.constant 0 : index
    %4 = vector.load %arg3[%c0_2, %c0_3] : memref<16x128xbf16, #tpu.memory_space<vmem>>, vector<16x128xbf16>
    %c0_4 = arith.constant 0 : index
    %c0_5 = arith.constant 0 : index
    %5 = vector.load %arg4[%c0_4, %c0_5] : memref<128x128xbf16, #tpu.memory_space<vmem>>, vector<128x128xbf16>
    %cst = arith.constant dense<0.000000e+00> : vector<16x128xf32>
    %6 = tpu.matmul %4, %5, %cst {dimension_numbers = #tpu.dot_dimension_numbers<[1], [0], [0], [1], [0, 0, 1, 1], [], []>} : vector<16x128xbf16>, vector<128x128xbf16>, vector<16x128xf32> -> vector<16x128xf32>
    %7 = arith.addf %3, %6 : vector<16x128xf32>
    %c0_6 = arith.constant 0 : index
    %c0_7 = arith.constant 0 : index
    %8 = vector.load %arg7[%c0_6, %c0_7] : memref<16x128xf32, #tpu.memory_space<vmem>>, vector<16x128xf32>
    tpu.vector_store %arg7[%c0_6, %c0_7], %7 {strides = array<i32>} : memref<16x128xf32, #tpu.memory_space<vmem>>, vector<16x128xf32>,
    %c0_i32_8 = arith.constant 0 : i32
    %9 = arith.cmpi eq, %arg2, %c0_i32_8 : i32
    %10 = arith.extui %9 : i1 to i32
    %c0_i32_9 = arith.constant 0 : i32
    %11 = arith.cmpi ne, %10, %c0_i32_9 : i32
    scf.if %11 {
      %c0_10 = arith.constant 0 : index
      %c0_11 = arith.constant 0 : index
      %12 = vector.load %arg7[%c0_10, %c0_11] : memref<16x128xf32, #tpu.memory_space<vmem>>, vector<16x128xf32>
      %c0_12 = arith.constant 0 : index
      %c0_13 = arith.constant 0 : index
      %13 = vector.load %arg5[%c0_12, %c0_13] : memref<1x128xf32, #tpu.memory_space<vmem>>, vector<1x128xf32>
      %14 = vector.broadcast %13 : vector<1x128xf32> to vector<16x128xf32>
      %15 = arith.addf %12, %14 : vector<16x128xf32>
      %cst_14 = arith.constant 0.000000e+00 : f32
      %16 = vector.broadcast %cst_14 : f32 to vector<16x128xf32>
      %17 = arith.maximumf %15, %16 : vector<16x128xf32>
      %c0_15 = arith.constant 0 : index
      %c0_16 = arith.constant 0 : index
      %18 = vector.load %arg6[%c0_15, %c0_16] : memref<16x128xf32, #tpu.memory_space<vmem>>, vector<16x128xf32>
      tpu.vector_store %arg6[%c0_15, %c0_16], %17 {strides = array<i32>} : memref<16x128xf32, #tpu.memory_space<vmem>>, vector<16x128xf32>,
    } else {
    }
    return
  }
  func.func @transform_0(%arg0: i32, %arg1: i32, %arg2: i32) -> (i32, i32) {
    %c0_i32 = arith.constant 0 : i32
    return %arg0, %arg2 : i32, i32
  }
  func.func @transform_1(%arg0: i32, %arg1: i32, %arg2: i32) -> (i32, i32) {
    %c0_i32 = arith.constant 0 : i32
    return %arg2, %arg1 : i32, i32
  }
  func.func @transform_2(%arg0: i32, %arg1: i32, %arg2: i32) -> (i32, i32) {
    %c0_i32 = arith.constant 0 : i32
    %c0_i32_0 = arith.constant 0 : i32
    return %c0_i32, %arg1 : i32, i32
  }
  func.func @transform_3(%arg0: i32, %arg1: i32, %arg2: i32) -> (i32, i32) {
    %c0_i32 = arith.constant 0 : i32
    return %arg0, %arg1 : i32, i32
  }
}

</mosaic_0001>

<llo_original>
// kernel: tpu_custom_call.1
$region0: #{tpu_custom_call.1}
  #allocation0 [shape = 'u32[]', space=smem, size = 0x4, offset = 0x4, fixed_abs, tag = 'smem constant byte address 0x4 - core index']
  #allocation1 [shape = 'u32[144,128]{1,0:T(1,128)}', space=vmem, size = 0x12000, scoped, tag = 'internal scratch']
  #allocation2 [shape = 'f32[16,128]{1,0:T(8,128)}', space=vmem, size = 0x2000, scoped, tag = 'scratch operand']
  %s0 = inlined_call_operand.hbm [shape: bf16[16,128], index: 0, kind: input, shape index: {}]
  %s1 = inlined_call_operand.hbm [shape: bf16[128,128], index: 1, kind: input, shape index: {}]
  %s2 = inlined_call_operand.vmem [shape: f32[1,128], index: 2, kind: input, shape index: {}]
  %s3 = inlined_call_operand.hbm [shape: f32[16,128], index: 3, kind: output, shape index: {}]
  %s4 = sld [smem:[#allocation0]]
  $region38: #{tpu_custom_call.1} parent=0
    _
  %s6 = ssub.s32 1, %s4
  %s7 = scalar_select 0, %s6, %s4
  $region1: #{tpu_custom_call.1} parent=0
    #allocation3 [shape = 'u8[4096]{0}', space=vmem, size = 0x1000, scoped, tag = 'input window, operand 0, single buffered']
    #allocation4 [shape = 's32[1]{0}', space=sflag, size = 0x4, scoped, tag = 'scoped memory for tpu_custom_call.1']
    #allocation5 [shape = 's32[1]{0}', space=sflag, size = 0x4, scoped, tag = 'scoped memory for tpu_custom_call.1']
    #allocation6 [shape = 'u8[32768]{0}', space=vmem, size = 0x8000, scoped, tag = 'input window, operand 1, single buffered']
    #allocation7 [shape = 's32[1]{0}', space=sflag, size = 0x4, scoped, tag = 'scoped memory for tpu_custom_call.1']
    #allocation8 [shape = 'u8[8192]{0}', space=vmem, size = 0x2000, scoped, tag = 'output window, operand 0, single buffered']
    %8 = vsyncpa [#allocation4], 0
    %9 = vsyncpa [#allocation7], 0
    %10 = vsyncpa [#allocation5], 0
    // Predicated region
    $region2: #{tpu_custom_call.1} parent=1 // pred_check
      _
    $region3: #{tpu_custom_call.1} parent=1 // pred_check_branch
      %12 = sbr.rel (0) target = $region5
    $region4: #{tpu_custom_call.1} parent=1 // pred_region
      %s14 = ssub.s32 128, 128
      %15 = vsyncadd [#allocation4], %s14
      %s16 = sshll.u32 [#allocation3], 4
      %s17 = int_to_ptr.vmem [resolvable:$true] %s16
      %22 = dma.hbm_to_vmem [thread:$0]  %s0, 128, %s17, [#allocation4], 64, 64, 4
    $region5: #{tpu_custom_call.1} parent=1 // pred_fallthru
      _
    // Predicated region
    $region6: #{tpu_custom_call.1} parent=1 // pred_check
      _
    $region7: #{tpu_custom_call.1} parent=1 // pred_check_branch
      %24 = sbr.rel (0) target = $region9
    $region8: #{tpu_custom_call.1} parent=1 // pred_region
      %s26 = ssub.s32 1024, 1024
      %27 = vsyncadd [#allocation7], %s26
      %s28 = sshll.u32 [#allocation6], 4
      %s29 = int_to_ptr.vmem [resolvable:$true] %s28
      %34 = dma.hbm_to_vmem [thread:$0]  %s1, 1024, %s29, [#allocation7], 64, 64, 4
    $region9: #{tpu_custom_call.1} parent=1 // pred_fallthru
      _
    // Predicated region
    $region10: #{tpu_custom_call.1} parent=1 // pred_check
      _
    $region11: #{tpu_custom_call.1} parent=1 // pred_check_branch
      %36 = sbr.rel (0) target = $region13
    $region12: #{tpu_custom_call.1} parent=1 // pred_region
      _
    $region13: #{tpu_custom_call.1} parent=1 // pred_fallthru
      _
    // Predicated region
    $region14: #{tpu_custom_call.1} parent=1 // pred_check
      _
    $region15: #{tpu_custom_call.1} parent=1 // pred_check_branch
      %38 = sbr.rel (0) target = $region17
    $region16: #{tpu_custom_call.1} parent=1 // pred_region
      %39 = dma.done [#allocation4], 128
    $region17: #{tpu_custom_call.1} parent=1 // pred_fallthru
      _
    // Predicated region
    $region18: #{tpu_custom_call.1} parent=1 // pred_check
      _
    $region19: #{tpu_custom_call.1} parent=1 // pred_check_branch
      %41 = sbr.rel (0) target = $region21
    $region20: #{tpu_custom_call.1} parent=1 // pred_region
      %42 = dma.done [#allocation7], 1024
    $region21: #{tpu_custom_call.1} parent=1 // pred_fallthru
      _
    %p44 = scmp.eq.s32.totalorder 0, 0
    // Predicated region
    $region22: #{tpu_custom_call.1} parent=1 // pred_check
      %p45 = pneg %p44
    $region23: #{tpu_custom_call.1} parent=1 // pred_check_branch
      %47 = sbr.rel (%p45) target = $region25
    $region24: #{tpu_custom_call.1} parent=1 // pred_region
      %48 = vst [vmem:[#allocation2] sm:$0xff] 0.0
      %49 = vst [vmem:[#allocation2 + $0x8] sm:$0xff] 0.0
    $region25: #{tpu_custom_call.1} parent=1 // pred_fallthru
      _
    %v50 = vld [vmem:[#allocation2] sm:$0xff]
    %v51 = vld [vmem:[#allocation2 + $0x8] sm:$0xff]
    %v52 = vld [vmem:[#allocation3] sm:$0xf]
    %v53 = vld [vmem:[#allocation3 + $0x4] sm:$0xf]
    %v54 = vld [vmem:[#allocation6] sm:$0xf]
    %v55 = vld [vmem:[#allocation6 + $0x4] sm:$0xf]
    %v56 = vld [vmem:[#allocation6 + $0x8] sm:$0xf]
    %v57 = vld [vmem:[#allocation6 + $0xc] sm:$0xf]
    %v58 = vld [vmem:[#allocation6 + $0x10] sm:$0xf]
    %v59 = vld [vmem:[#allocation6 + $0x14] sm:$0xf]
    %v60 = vld [vmem:[#allocation6 + $0x18] sm:$0xf]
    %v61 = vld [vmem:[#allocation6 + $0x1c] sm:$0xf]
    %v62 = vld [vmem:[#allocation6 + $0x20] sm:$0xf]
    %v63 = vld [vmem:[#allocation6 + $0x24] sm:$0xf]
    %v64 = vld [vmem:[#allocation6 + $0x28] sm:$0xf]
    %v65 = vld [vmem:[#allocation6 + $0x2c] sm:$0xf]
    %v66 = vld [vmem:[#allocation6 + $0x30] sm:$0xf]
    %v67 = vld [vmem:[#allocation6 + $0x34] sm:$0xf]
    %v68 = vld [vmem:[#allocation6 + $0x38] sm:$0xf]
    %v69 = vld [vmem:[#allocation6 + $0x3c] sm:$0xf]
    %v72 = vunpack.c.l.b16 %v52
    %v73 = vunpack.c.l.b16 %v53
    %v74 = vpack.c.b16 %v73, %v72
    %v92 = vunpack.c.l.b16 %v54
    %v93 = vunpack.c.l.b16 %v55
    %v94 = vunpack.c.l.b16 %v56
    %v95 = vunpack.c.l.b16 %v57
    %v96 = vunpack.c.l.b16 %v58
    %v97 = vunpack.c.l.b16 %v59
    %v98 = vunpack.c.l.b16 %v60
    %v99 = vunpack.c.l.b16 %v61
    %v100 = vunpack.c.l.b16 %v62
    %v101 = vunpack.c.l.b16 %v63
    %v102 = vunpack.c.l.b16 %v64
    %v103 = vunpack.c.l.b16 %v65
    %v104 = vunpack.c.l.b16 %v66
    %v105 = vunpack.c.l.b16 %v67
    %v106 = vunpack.c.l.b16 %v68
    %v107 = vunpack.c.l.b16 %v69
    %v108 = vpack.c.b16 %v93, %v92
    %v109 = vpack.c.b16 %v95, %v94
    %v110 = vpack.c.b16 %v97, %v96
    %v111 = vpack.c.b16 %v99, %v98
    %v112 = vpack.c.b16 %v101, %v100
    %v113 = vpack.c.b16 %v103, %v102
    %v114 = vpack.c.b16 %v105, %v104
    %v115 = vpack.c.b16 %v107, %v106
    %124 = vmatprep.subr.bf16.mxu0 0
    %125 = vmatpush1.bf16.msra.mxu0 %v108
    %126 = vmatprep.subr.bf16.mxu0 0
    %127 = vmatpush1.bf16.msra.mxu0 %v109
    %128 = vmatprep.subr.bf16.mxu0 0
    %129 = vmatpush1.bf16.msra.mxu0 %v110
    %130 = vmatprep.subr.bf16.mxu0 0
    %131 = vmatpush1.bf16.msra.mxu0 %v111
    %132 = vmatprep.subr.bf16.mxu0 0
    %133 = vmatpush1.bf16.msra.mxu0 %v112
    %134 = vmatprep.subr.bf16.mxu0 0
    %135 = vmatpush1.bf16.msra.mxu0 %v113
    %136 = vmatprep.subr.bf16.mxu0 0
    %137 = vmatpush1.bf16.msra.mxu0 %v114
    %138 = vmatprep.subr.bf16.mxu0 0
    %139 = vmatpush1.bf16.msra.mxu0 %v115
    %140 = vmatprep.subr.bf16.mxu0 0
    %141 = vmatpush1.bf16.msra.mxu0 0
    %142 = vmatprep.subr.bf16.mxu0 0
    %143 = vmatpush1.bf16.msra.mxu0 0
    %144 = vmatprep.subr.bf16.mxu0 0
    %145 = vmatpush1.bf16.msra.mxu0 0
    %146 = vmatprep.subr.bf16.mxu0 0
    %147 = vmatpush1.bf16.msra.mxu0 0
    %148 = vmatprep.subr.bf16.mxu0 0
    %149 = vmatpush1.bf16.msra.mxu0 0
    %150 = vmatprep.subr.bf16.mxu0 0
    %151 = vmatpush1.bf16.msra.mxu0 0
    %152 = vmatprep.subr.bf16.mxu0 0
    %153 = vmatpush1.bf16.msra.mxu0 0
    %154 = vmatprep.subr.bf16.mxu0 0
    %155 = vmatpush1.bf16.msra.mxu0 0
    %156 = vmatprep.mubr.bf16.mxu0 0
    %157 = vmatmul.mubr.bf16.gmra.mrb[0].mxu0 %v74
    %v158 = vpop.f32.mrb[0].mxu0
    %v159 = vadd.f32 0.0, %v158
    %v160 = vpop.f32.mrb[0].mxu0
    %v161 = vpop.f32.mrb[0].mxu0
    %v162 = vadd.f32 0.0, %v161
    %v163 = vpop.f32.mrb[0].mxu0
    %164 = vdwg.mxu0
    %v165 = vadd.f32 %v50, %v159
    %v166 = vadd.f32 %v51, %v162
    %167 = vst [vmem:[#allocation2] sm:$0xff] %v165
    %168 = vst [vmem:[#allocation2 + $0x8] sm:$0xff] %v166
    // Predicated region
    $region26: #{tpu_custom_call.1} parent=1 // pred_check
      %p169 = pneg %p44
    $region27: #{tpu_custom_call.1} parent=1 // pred_check_branch
      %171 = sbr.rel (%p169) target = $region29
    $region28: #{tpu_custom_call.1} parent=1 // pred_region
      %v172 = vld [vmem:[#allocation2] sm:$0xff]
      %v173 = vld [vmem:[#allocation2 + $0x8] sm:$0xff]
      %v174 = vld [vmem:[%s2] sm:$0x1]
      %v176 = vlaneseq
      %v177 = vshrl.u32 %v176, 7
      %v178 = vsub.s32 0, %v177
      %v179 = vrot.slane %v174, %v178
      %v181 = vadd.f32 %v172, %v179
      %v182 = vadd.f32 %v173, %v179
      %v183 = vmax.f32 %v181, 0.0
      %v184 = vmax.f32 %v182, 0.0
      %185 = vst [vmem:[#allocation8] sm:$0xff] %v183
      %186 = vst [vmem:[#allocation8 + $0x8] sm:$0xff] %v184
    $region29: #{tpu_custom_call.1} parent=1 // pred_fallthru
      _
    // Predicated region
    $region30: #{tpu_custom_call.1} parent=1 // pred_check
      _
    $region31: #{tpu_custom_call.1} parent=1 // pred_check_branch
      %188 = sbr.rel (0) target = $region33
    $region32: #{tpu_custom_call.1} parent=1 // pred_region
      %s190 = ssub.s32 256, 256
      %191 = vsyncadd [#allocation5], %s190
      %s192 = sshll.u32 [#allocation8], 4
      %s193 = int_to_ptr.vmem [resolvable:$true] %s192
      %198 = dma.vmem_to_hbm [thread:$0]  %s193, 256, %s3, [#allocation5], 128, 128, 8
    $region33: #{tpu_custom_call.1} parent=1 // pred_fallthru
      _
    // Predicated region
    $region34: #{tpu_custom_call.1} parent=1 // pred_check
      _
    $region35: #{tpu_custom_call.1} parent=1 // pred_check_branch
      %200 = sbr.rel (0) target = $region37
    $region36: #{tpu_custom_call.1} parent=1 // pred_region
      %201 = dma.done [#allocation5], 256
    $region37: #{tpu_custom_call.1} parent=1 // pred_fallthru
      _
    %202 = vsyncpa [#allocation4], 1
    %203 = vsyncpa [#allocation7], 1
    %204 = vsyncpa [#allocation5], 1

</llo_original>
